<compile_context>
chip_gen: v5e
topology: v5e:2x2
jax: 0.10.0
libtpu: 0.0.40
codegen_flags: <defaults>
</compile_context>

<pallas_src>
import math

import jax
import jax.numpy as jnp
from jax.experimental import pallas as pl
from jax.experimental.pallas import tpu as pltpu


_GROUP = 8  # sublane group: rows gathered / waited-on together


def _round_up(x, m):
    return ((x + m - 1) // m) * m


def _vmem_capacity_bytes():
    try:
        info = pltpu.get_tpu_info()
        cap = getattr(info, "vmem_capacity_bytes", None)
        if cap:
            return int(cap)
    except Exception:
        pass
    return 64 << 20  # conservative default (v7x per-TensorCore)


def _make_resident_kernel(tok_block, scale, out_dtype):
    """Fast path: table copied HBM->VMEM once; rows gathered from VMEM.

    ids_ref    : SMEM int32[n_padded]   (scalar prefetch)
    emb_hbm    : HBM  [V, D]            (memory_space=pl.ANY)
    out_ref    : VMEM [tok_block, D]    (dense output tile)
    table_vmem : VMEM [V, D]            (persists across grid steps)
    load_sem   : DMA semaphore ()
    """

    def kernel(ids_ref, emb_hbm, out_ref, table_vmem, load_sem):
        # One-time whole-table load.  Grid axis is "arbitrary" (sequential on
        # one core), so program 0 runs first and the scratch table persists.
        @pl.when(pl.program_id(0) == 0)
        def _():
            cp = pltpu.make_async_copy(emb_hbm, table_vmem, load_sem)
            cp.start()
            cp.wait()

        base = pl.program_id(0) * tok_block

        # Gather rows with in-VMEM dynamic loads; 8-way static unroll gives
        # the LLO scheduler visibility across rows.
        @pl.loop(0, tok_block // _GROUP)
        def _(g):
            jg = g * _GROUP
            for u in range(_GROUP):
                j = jg + u
                row = ids_ref[base + j]
                out_ref[pl.ds(j, 1), :] = table_vmem[pl.ds(row, 1), :]

        # One dense lane/sublane-aligned VPU pass for the sqrt(d_model) scale.
        out_ref[...] = (out_ref[...].astype(jnp.float32) * scale).astype(out_dtype)

    return kernel


def _make_hbm_gather_kernel(tok_block, n_buf_groups, scale, out_dtype):
    """Fallback: per-row HBM DMAs straight into out_ref, grouped 8-row waits.

    ids_ref : SMEM int32[n_padded]
    emb_hbm : HBM  [V, D]
    out_ref : VMEM [tok_block, D]
    sems    : DMA semaphores [n_buf_groups]  (ring of outstanding 8-row groups)
    """
    n_groups = tok_block // _GROUP
    mask = n_buf_groups - 1  # n_buf_groups is a power of two

    def kernel(ids_ref, emb_hbm, out_ref, sems):
        base = pl.program_id(0) * tok_block

        def read_rows(g):
            return [ids_ref[base + g * _GROUP + u] for u in range(_GROUP)]

        def start_group(g, rows):
            sem = sems.at[g & mask]
            for u in range(_GROUP):
                pltpu.make_async_copy(
                    emb_hbm.at[pl.ds(rows[u], 1), :],
                    out_ref.at[pl.ds(g * _GROUP + u, 1), :],
                    sem,
                ).start()

        def wait_group(g):
            # The 8 single-row copies of this group all signal the same
            # semaphore; one wait sized for the 8-row destination slice
            # retires them together (the HBM src index is irrelevant — only
            # the transfer size matters for the wait amount).
            pltpu.make_async_copy(
                emb_hbm.at[pl.ds(0, _GROUP), :],
                out_ref.at[pl.ds(g * _GROUP, _GROUP), :],
                sems.at[g & mask],
            ).wait()

        # Prologue: fill the ring with n_buf_groups in-flight groups.
        @pl.loop(0, n_buf_groups)
        def _(g):
            start_group(g, read_rows(g))

        # Steady state: hoist SMEM id reads above the wait (waits break
        # sst->sld forwarding), retire the oldest group, reuse its slot.
        @pl.loop(0, n_groups - n_buf_groups)
        def _(g):
            rows = read_rows(g + n_buf_groups)
            wait_group(g)
            start_group(g + n_buf_groups, rows)

        # Epilogue: drain remaining in-flight groups.
        @pl.loop(n_groups - n_buf_groups, n_groups)
        def _(g):
            wait_group(g)

        # Scale in place: rows were DMA'd directly into out_ref.
        out_ref[...] = (out_ref[...].astype(jnp.float32) * scale).astype(out_dtype)

    return kernel


def input_embeddings(token_ids, embedding_matrix, d_model, *,
                     block_tokens=512, n_outstanding_rows=32,
                     force_hbm_gather=False):
    """token_ids: [B, S] int; embedding_matrix: [V, D] -> [B, S, D]."""
    b, s = token_ids.shape
    v, d = embedding_matrix.shape
    assert d == d_model
    assert v >= _GROUP

    n_tokens = b * s
    tok_block = min(block_tokens, _round_up(n_tokens, _GROUP))
    tok_block = _round_up(tok_block, _GROUP)
    n_padded = _round_up(n_tokens, tok_block)

    # Clamp ids so a bad/padding token can never trigger an OOB HBM read.
    flat_ids = jnp.clip(token_ids.reshape(-1).astype(jnp.int32), 0, v - 1)
    if n_padded != n_tokens:
        flat_ids = jnp.pad(flat_ids, (0, n_padded - n_tokens))

    scale = math.sqrt(d_model)
    out_dtype = embedding_matrix.dtype
    itemsize = jnp.dtype(out_dtype).itemsize

    table_bytes = v * d * itemsize
    out_tile_bytes = tok_block * d * itemsize
    headroom = 4 << 20
    vmem_cap = _vmem_capacity_bytes()
    use_resident = (not force_hbm_gather) and (
        table_bytes + 2 * out_tile_bytes + headroom <= vmem_cap)

    if use_resident:
        kernel = _make_resident_kernel(tok_block, scale, out_dtype)
        scratch = [
            pltpu.VMEM((v, d), embedding_matrix.dtype),
            pltpu.SemaphoreType.DMA(()),
        ]
        # The one-time table load requires sequential grid execution on one
        # core (scratch is per-core; a "parallel" axis would leave the second
        # TensorCore's table uninitialized).
        dim_semantics = ("arbitrary",)
        vmem_limit = int(min(vmem_cap, table_bytes + 2 * out_tile_bytes + headroom))
        bytes_accessed = table_bytes + n_padded * d * itemsize + n_padded * 4
    else:
        n_groups = tok_block // _GROUP
        n_buf_groups = min(max(1, n_outstanding_rows // _GROUP), n_groups)
        while n_buf_groups & (n_buf_groups - 1):  # round down to power of two
            n_buf_groups -= 1
        kernel = _make_hbm_gather_kernel(tok_block, n_buf_groups, scale, out_dtype)
        scratch = [pltpu.SemaphoreType.DMA((n_buf_groups,))]
        # Blocks are independent -> lets v7x shard them across both TCs.
        dim_semantics = ("parallel",)
        vmem_limit = None
        bytes_accessed = 2 * n_padded * d * itemsize + n_padded * 4

    out_flat = pl.pallas_call(
        kernel,
        out_shape=jax.ShapeDtypeStruct((n_padded, d), out_dtype),
        grid_spec=pltpu.PrefetchScalarGridSpec(
            num_scalar_prefetch=1,
            grid=(n_padded // tok_block,),
            in_specs=[
                # Embedding table stays in HBM; we DMA from it manually.
                pl.BlockSpec(memory_space=pl.ANY),
            ],
            out_specs=pl.BlockSpec((tok_block, d), lambda i, ids: (i, 0)),
            scratch_shapes=scratch,
        ),
        compiler_params=pltpu.CompilerParams(
            dimension_semantics=dim_semantics,
            vmem_limit_bytes=vmem_limit,
        ),
        cost_estimate=pl.CostEstimate(
            flops=n_padded * d,
            transcendentals=0,
            bytes_accessed=bytes_accessed,
        ),
    )(flat_ids, embedding_matrix)

    if n_padded != n_tokens:
        # TODO(synk): for production shapes pick tok_block | n_tokens to avoid
        # this extra HBM read+write of the output.
        out_flat = out_flat[:n_tokens]
    return out_flat.reshape(b, s, d)


if __name__ == "__main__":
    # Small, deterministic synthetic setup (no tokenizer / checkpoint load).
    d_model = 128          # lane-aligned stand-in for 512
    vocab_size = 512       # stand-in for BERT's 30522
    batch, seq = 2, 36     # 72 tokens

    key = jax.random.PRNGKey(0)
    k_emb, k_ids = jax.random.split(key)

    embedding_matrix = jax.random.normal(
        k_emb, (vocab_size, d_model), dtype=jnp.float32
    )
    token_ids = jax.random.randint(
        k_ids, (batch, seq), minval=0, maxval=vocab_size, dtype=jnp.int32
    )

    ref = embedding_matrix[token_ids] * math.sqrt(d_model)

    # 1) Resident-table fast path, multi-block grid + padded last block.
    out1 = jax.block_until_ready(
        input_embeddings(token_ids, embedding_matrix, d_model, block_tokens=32))
    assert out1.shape == (batch, seq, d_model)
    assert jnp.allclose(out1, ref, atol=1e-5, rtol=1e-5)

    # 2) Resident-table fast path, defaults (single block, no padding).
    out2 = jax.block_until_ready(
        input_embeddings(token_ids, embedding_matrix, d_model))
    assert jnp.allclose(out2, ref, atol=1e-5, rtol=1e-5)

    # 3) HBM-gather fallback path (forced), grouped waits + DMA ring.
    out3 = jax.block_until_ready(
        input_embeddings(token_ids, embedding_matrix, d_model,
                         block_tokens=32, n_outstanding_rows=16,
                         force_hbm_gather=True))
    assert jnp.allclose(out3, ref, atol=1e-5, rtol=1e-5)

    print("KERNEL_OK")
</pallas_src>

<mosaic_0001>
module attributes {stable_mosaic.version = 11 : i64} {
  func.func @kernel(%arg0: i32, %arg1: memref<96xi32, #tpu.memory_space<smem>>, %arg2: memref<512x128xf32, #tpu.memory_space<any>>, %arg3: memref<32x128xf32, #tpu.memory_space<vmem>>, %arg4: memref<512x128xf32, #tpu.memory_space<vmem>>, %arg5: memref<!tpu.dma_semaphore, #tpu.memory_space<semaphore_mem>>) attributes {dimension_semantics = [#tpu.dimension_semantics<arbitrary>], iteration_bounds = array<i64: 3>, scalar_prefetch = 1 : i64, scratch_operands = 2 : i64, tpu.core_type = #tpu.core_type<tc>, window_params = [{}, {transform_indices = @transform_1, window_bounds = array<i64: 32, 128>}]} {
    %c0_i32 = arith.constant 0 : i32
    %0 = arith.cmpi eq, %arg0, %c0_i32 : i32
    %1 = arith.extui %0 : i1 to i32
    %c0_i32_0 = arith.constant 0 : i32
    %2 = arith.cmpi ne, %1, %c0_i32_0 : i32
    scf.if %2 {
      tpu.enqueue_dma source(%arg2 : memref<512x128xf32, #tpu.memory_space<any>>) target(%arg4 : memref<512x128xf32, #tpu.memory_space<vmem>>) target_semaphore(%arg5 : memref<!tpu.dma_semaphore, #tpu.memory_space<semaphore_mem>>)
      tpu.wait_dma2 semaphore(%arg5 : memref<!tpu.dma_semaphore, #tpu.memory_space<semaphore_mem>>) src(%arg2 : memref<512x128xf32, #tpu.memory_space<any>>) dst(%arg4 : memref<512x128xf32, #tpu.memory_space<vmem>>)
    } else {
    }
    %c32_i32 = arith.constant 32 : i32
    %3 = arith.muli %arg0, %c32_i32 : i32
    %c0_i32_1 = arith.constant 0 : i32
    %c4_i32 = arith.constant 4 : i32
    %4 = arith.addi %c0_i32_1, %c4_i32 : i32
    %c1_i32 = arith.constant 1 : i32
    scf.for %arg6 = %c0_i32_1 to %4 step %c1_i32  : i32 {
      %c1_i32_6 = arith.constant 1 : i32
      %9 = arith.muli %arg6, %c1_i32_6 : i32
      %c0_i32_7 = arith.constant 0 : i32
      %10 = arith.addi %c0_i32_7, %9 : i32
      %c8_i32 = arith.constant 8 : i32
      %11 = arith.muli %10, %c8_i32 : i32
      %c0_i32_8 = arith.constant 0 : i32
      %12 = arith.addi %11, %c0_i32_8 : i32
      %13 = arith.addi %3, %12 : i32
      %14 = arith.index_cast %13 : i32 to index
      %15 = memref.load %arg1[%14] : memref<96xi32, #tpu.memory_space<smem>>
      %16 = arith.index_cast %15 : i32 to index
      %c0_9 = arith.constant 0 : index
      %17 = vector.load %arg4[%16, %c0_9] : memref<512x128xf32, #tpu.memory_space<vmem>>, vector<1x128xf32>
      %18 = arith.index_cast %12 : i32 to index
      %c0_10 = arith.constant 0 : index
      %19 = vector.load %arg3[%18, %c0_10] : memref<32x128xf32, #tpu.memory_space<vmem>>, vector<1x128xf32>
      tpu.vector_store %arg3[%18, %c0_10], %17 {strides = array<i32>} : memref<32x128xf32, #tpu.memory_space<vmem>>, vector<1x128xf32>,
      %c1_i32_11 = arith.constant 1 : i32
      %20 = arith.addi %11, %c1_i32_11 : i32
      %21 = arith.addi %3, %20 : i32
      %22 = arith.index_cast %21 : i32 to index
      %23 = memref.load %arg1[%22] : memref<96xi32, #tpu.memory_space<smem>>
      %24 = arith.index_cast %23 : i32 to index
      %c0_12 = arith.constant 0 : index
      %25 = vector.load %arg4[%24, %c0_12] : memref<512x128xf32, #tpu.memory_space<vmem>>, vector<1x128xf32>
      %26 = arith.index_cast %20 : i32 to index
      %c0_13 = arith.constant 0 : index
      %27 = vector.load %arg3[%26, %c0_13] : memref<32x128xf32, #tpu.memory_space<vmem>>, vector<1x128xf32>
      tpu.vector_store %arg3[%26, %c0_13], %25 {strides = array<i32>} : memref<32x128xf32, #tpu.memory_space<vmem>>, vector<1x128xf32>,
      %c2_i32 = arith.constant 2 : i32
      %28 = arith.addi %11, %c2_i32 : i32
      %29 = arith.addi %3, %28 : i32
      %30 = arith.index_cast %29 : i32 to index
      %31 = memref.load %arg1[%30] : memref<96xi32, #tpu.memory_space<smem>>
      %32 = arith.index_cast %31 : i32 to index
      %c0_14 = arith.constant 0 : index
      %33 = vector.load %arg4[%32, %c0_14] : memref<512x128xf32, #tpu.memory_space<vmem>>, vector<1x128xf32>
      %34 = arith.index_cast %28 : i32 to index
      %c0_15 = arith.constant 0 : index
      %35 = vector.load %arg3[%34, %c0_15] : memref<32x128xf32, #tpu.memory_space<vmem>>, vector<1x128xf32>
      tpu.vector_store %arg3[%34, %c0_15], %33 {strides = array<i32>} : memref<32x128xf32, #tpu.memory_space<vmem>>, vector<1x128xf32>,
      %c3_i32 = arith.constant 3 : i32
      %36 = arith.addi %11, %c3_i32 : i32
      %37 = arith.addi %3, %36 : i32
      %38 = arith.index_cast %37 : i32 to index
      %39 = memref.load %arg1[%38] : memref<96xi32, #tpu.memory_space<smem>>
      %40 = arith.index_cast %39 : i32 to index
      %c0_16 = arith.constant 0 : index
      %41 = vector.load %arg4[%40, %c0_16] : memref<512x128xf32, #tpu.memory_space<vmem>>, vector<1x128xf32>
      %42 = arith.index_cast %36 : i32 to index
      %c0_17 = arith.constant 0 : index
      %43 = vector.load %arg3[%42, %c0_17] : memref<32x128xf32, #tpu.memory_space<vmem>>, vector<1x128xf32>
      tpu.vector_store %arg3[%42, %c0_17], %41 {strides = array<i32>} : memref<32x128xf32, #tpu.memory_space<vmem>>, vector<1x128xf32>,
      %c4_i32_18 = arith.constant 4 : i32
      %44 = arith.addi %11, %c4_i32_18 : i32
      %45 = arith.addi %3, %44 : i32
      %46 = arith.index_cast %45 : i32 to index
      %47 = memref.load %arg1[%46] : memref<96xi32, #tpu.memory_space<smem>>
      %48 = arith.index_cast %47 : i32 to index
      %c0_19 = arith.constant 0 : index
      %49 = vector.load %arg4[%48, %c0_19] : memref<512x128xf32, #tpu.memory_space<vmem>>, vector<1x128xf32>
      %50 = arith.index_cast %44 : i32 to index
      %c0_20 = arith.constant 0 : index
      %51 = vector.load %arg3[%50, %c0_20] : memref<32x128xf32, #tpu.memory_space<vmem>>, vector<1x128xf32>
      tpu.vector_store %arg3[%50, %c0_20], %49 {strides = array<i32>} : memref<32x128xf32, #tpu.memory_space<vmem>>, vector<1x128xf32>,
      %c5_i32 = arith.constant 5 : i32
      %52 = arith.addi %11, %c5_i32 : i32
      %53 = arith.addi %3, %52 : i32
      %54 = arith.index_cast %53 : i32 to index
      %55 = memref.load %arg1[%54] : memref<96xi32, #tpu.memory_space<smem>>
      %56 = arith.index_cast %55 : i32 to index
      %c0_21 = arith.constant 0 : index
      %57 = vector.load %arg4[%56, %c0_21] : memref<512x128xf32, #tpu.memory_space<vmem>>, vector<1x128xf32>
      %58 = arith.index_cast %52 : i32 to index
      %c0_22 = arith.constant 0 : index
      %59 = vector.load %arg3[%58, %c0_22] : memref<32x128xf32, #tpu.memory_space<vmem>>, vector<1x128xf32>
      tpu.vector_store %arg3[%58, %c0_22], %57 {strides = array<i32>} : memref<32x128xf32, #tpu.memory_space<vmem>>, vector<1x128xf32>,
      %c6_i32 = arith.constant 6 : i32
      %60 = arith.addi %11, %c6_i32 : i32
      %61 = arith.addi %3, %60 : i32
      %62 = arith.index_cast %61 : i32 to index
      %63 = memref.load %arg1[%62] : memref<96xi32, #tpu.memory_space<smem>>
      %64 = arith.index_cast %63 : i32 to index
      %c0_23 = arith.constant 0 : index
      %65 = vector.load %arg4[%64, %c0_23] : memref<512x128xf32, #tpu.memory_space<vmem>>, vector<1x128xf32>
      %66 = arith.index_cast %60 : i32 to index
      %c0_24 = arith.constant 0 : index
      %67 = vector.load %arg3[%66, %c0_24] : memref<32x128xf32, #tpu.memory_space<vmem>>, vector<1x128xf32>
      tpu.vector_store %arg3[%66, %c0_24], %65 {strides = array<i32>} : memref<32x128xf32, #tpu.memory_space<vmem>>, vector<1x128xf32>,
      %c7_i32 = arith.constant 7 : i32
      %68 = arith.addi %11, %c7_i32 : i32
      %69 = arith.addi %3, %68 : i32
      %70 = arith.index_cast %69 : i32 to index
      %71 = memref.load %arg1[%70] : memref<96xi32, #tpu.memory_space<smem>>
      %72 = arith.index_cast %71 : i32 to index
      %c0_25 = arith.constant 0 : index
      %73 = vector.load %arg4[%72, %c0_25] : memref<512x128xf32, #tpu.memory_space<vmem>>, vector<1x128xf32>
      %74 = arith.index_cast %68 : i32 to index
      %c0_26 = arith.constant 0 : index
      %75 = vector.load %arg3[%74, %c0_26] : memref<32x128xf32, #tpu.memory_space<vmem>>, vector<1x128xf32>
      tpu.vector_store %arg3[%74, %c0_26], %73 {strides = array<i32>} : memref<32x128xf32, #tpu.memory_space<vmem>>, vector<1x128xf32>,
    }
    %c4_i32_2 = arith.constant 4 : i32
    %c0 = arith.constant 0 : index
    %c0_3 = arith.constant 0 : index
    %5 = vector.load %arg3[%c0, %c0_3] : memref<32x128xf32, #tpu.memory_space<vmem>>, vector<32x128xf32>
    %cst = arith.constant 11.3137083 : f32
    %6 = vector.broadcast %cst : f32 to vector<32x128xf32>
    %7 = arith.mulf %5, %6 : vector<32x128xf32>
    %c0_4 = arith.constant 0 : index
    %c0_5 = arith.constant 0 : index
    %8 = vector.load %arg3[%c0_4, %c0_5] : memref<32x128xf32, #tpu.memory_space<vmem>>, vector<32x128xf32>
    tpu.vector_store %arg3[%c0_4, %c0_5], %7 {strides = array<i32>} : memref<32x128xf32, #tpu.memory_space<vmem>>, vector<32x128xf32>,
    return
  }
  func.func @transform_1(%arg0: i32, %arg1: memref<96xi32, #tpu.memory_space<smem>>) -> (i32, i32) {
    %c0_i32 = arith.constant 0 : i32
    %c0_i32_0 = arith.constant 0 : i32
    return %arg0, %c0_i32 : i32, i32
  }
}

</mosaic_0001>

<llo_original>
// kernel: tpu_custom_call.1
$region0: #{tpu_custom_call.1}
  #allocation0 [shape = 'u32[]', space=smem, size = 0x4, offset = 0x4, fixed_abs, tag = 'smem constant byte address 0x4 - core index']
  #allocation1 [shape = 'u32[72,128]{1,0:T(1,128)}', space=vmem, size = 0x9000, scoped, tag = 'internal scratch']
  #allocation2 [shape = 'f32[512,128]{1,0:T(8,128)}', space=vmem, size = 0x40000, scoped, tag = 'scratch operand']
  #allocation3 [shape = 's32[1]{0}', space=sflag, size = 0x4, scoped, tag = 'scratch operand']
  #allocation4 [shape = 's32[1]{0}', space=sflag, size = 0x4, scoped, tag = 'scoped memory for tpu_custom_call.1']
  #allocation5 [shape = 'u8[512]{0}', space=smem, size = 0x200, scoped, tag = 'prefetched SMEM operand 0']
  #allocation8 [shape = 's32[]', space=sflag, size = 0x4, offset = 0, fixed_abs, tag = 'sflag constant byte address 0x0 - dummy sync flag']
  #allocation9 [shape = 's32[]', space=sflag, size = 0x4, offset = 0, fixed_abs, tag = 'sflag constant byte address 0x0 - dummy sync flag']
  #allocation10 [shape = 'u32[]', space=smem, size = 0x4, offset = 0x44, fixed_abs, tag = 'smem constant byte address 0x44 - assertion arg 0']
  #allocation11 [shape = 'u32[]', space=smem, size = 0x4, offset = 0x48, fixed_abs, tag = 'smem constant byte address 0x48 - assertion arg 1']
  %s0 = inlined_call_operand.hbm [shape: s32[96], index: 0, kind: input, shape index: {}]
  %s1 = inlined_call_operand.hbm [shape: f32[512,128], index: 1, kind: input, shape index: {}]
  %s2 = inlined_call_operand.hbm [shape: f32[96,128], index: 2, kind: output, shape index: {}]
  %s3 = sld [smem:[#allocation0]]
  $region40: #{tpu_custom_call.1} parent=0
    _
  %s5 = ssub.s32 1, %s3
  %s6 = scalar_select 0, %s5, %s3
  %s8 = sshll.u32 %s0, 4
  %s9 = int_to_ptr.hbm [resolvable:$true] %s8
  %11 = dma.hbm_to_smem %s9, 16, [#allocation5], [#allocation4]
  %13 = dma.done [#allocation4], 16
  %14 = sfence
  $region1: #{tpu_custom_call.1} parent=0
    #allocation6 [shape = 'u8[32768]{0}', space=vmem, size = 0x8000, scoped, tag = 'output window, operand 0']
    #allocation7 [shape = 's32[2]{0}', space=sflag, size = 0x8, scoped, tag = 'scoped memory for tpu_custom_call.1']
    %15 = vsyncpa [#allocation7], 0
    %s16 = scalar_lea.sflag [#allocation7], 1
    %17 = vsyncpa %s16, 0
    loop: start=0, step=1, limit=4
    $region2: #{tpu_custom_call.1} parent=1 // loop_pre_header
      _
    $region3: #{tpu_custom_call.1} parent=1 // loop_header
      %s19 = sphi 0, %s23
      %p20 = scmp.ge.s32.totalorder %s19, 4
      %s28 = sphi 0, %s30
      %s31 = sphi 0, %s28
      %s41 = sphi 0, %s31
    $region4: #{tpu_custom_call.1} parent=1 // loop_header_branch
      %22 = sbr.rel (%p20) target = $region8
    $region5: #{tpu_custom_call.1} parent=1 // loop_body
      %s24 = ssub.s32 %s19, 1
      %s25 = sadd.s32 %s19, 1
      %s26 = ssub.s32 %s19, %s25
      %p27 = scmp.eq.s32.totalorder %s26, 0
      %s29 = sadd.s32 %s28, 1
      %s30 = scalar_select %p27, %s28, %s29
      %p32 = pneg %p27
      %p33 = scmp.eq.s32.totalorder %s19, 2
      %p34 = por %p32, %p33
      %p35 = scmp.ne.s32.totalorder %s28, %s31
      %p36 = scmp.eq.s32.totalorder %s19, 0
      %p37 = por %p35, %p36
      %p38 = scmp.ne.s32.totalorder %s28, %s31
      %p39 = scmp.eq.s32.totalorder %s24, 2
      %p40 = por %p38, %p39
      %p42 = scmp.ne.s32.totalorder %s31, %s41
      %p43 = scmp.eq.s32.totalorder %s24, 0
      %p44 = por %p42, %p43
      %p45 = scmp.lt.s32.totalorder %s19, 3
      // Predicated region
      $region9: #{tpu_custom_call.1} parent=5 // pred_check
        %p46 = pneg %p45
      $region10: #{tpu_custom_call.1} parent=5 // pred_check_branch
        %48 = sbr.rel (%p46) target = $region12
      $region11: #{tpu_custom_call.1} parent=5 // pred_region
        %p49 = pneg %p37
        %p50 = pneg %p34
        %s51 = sand.u32 %s28, 1
        %s52 = scalar_lea.sflag [#allocation7], %s51
        %s53 = sand.u32 %s28, 1
        %s54 = smul.addr %s53, 32
        %s55 = scalar_lea.vmem [#allocation6], %s54
        %s56 = smul.u32 4, %s19
        %p57 = scmp.eq.s32.totalorder %s19, 0
        // Predicated region
        $region13: #{tpu_custom_call.1} parent=11 // pred_check
          %p58 = pneg %p57
        $region14: #{tpu_custom_call.1} parent=11 // pred_check_branch
          %60 = sbr.rel (%p58) target = $region16
        $region15: #{tpu_custom_call.1} parent=11 // pred_region
          // Predicated region
          $region17: #{tpu_custom_call.1} parent=15 // pred_check
            _
          $region18: #{tpu_custom_call.1} parent=15 // pred_check_branch
            %62 = sbr.rel target = $region20
          $region19: #{tpu_custom_call.1} parent=15 // pred_region
            %63 = sst [smem:[#allocation10]] [#allocation9]
            %64 = sst [smem:[#allocation11]] [#allocation8]
          $region20: #{tpu_custom_call.1} parent=15 // pred_fallthru
            _
          %66 = shalt.err (0)
          %s68 = sshll.u32 %s1, 4
          %s69 = int_to_ptr.hbm [resolvable:$true] %s68
          %s70 = sshll.u32 [#allocation2], 4
          %s71 = int_to_ptr.vmem [resolvable:$true] %s70
          %73 = dma.hbm_to_vmem [thread:$0]  %s69, 8192, %s71, [#allocation3]
          %s74 = smul.u32 512, 1
          %s75 = sshll.u32 %s74, 4
          %76 = dma.done [#allocation3], %s75
        $region16: #{tpu_custom_call.1} parent=11 // pred_fallthru
          _
        %s77 = smul.u32 %s19, 32
        loop: start=0, step=1, limit=4
        $region21: #{tpu_custom_call.1} parent=11 // loop_pre_header
          _
        $region22: #{tpu_custom_call.1} parent=11 // loop_header
          %s79 = sphi 0, %s83
          %p80 = scmp.ge.s32.totalorder %s79, 4
        $region23: #{tpu_custom_call.1} parent=11 // loop_header_branch
          %82 = sbr.rel (%p80) target = $region27
        $region24: #{tpu_custom_call.1} parent=11 // loop_body
          %s84 = smul.u32 %s79, 8
          %s85 = sadd.s32 %s77, %s84
          %s86 = sld [smem:[#allocation5 + %s85]]
          %s87 = scalar_lea.vmem [#allocation2], %s86
          %v88 = vld [vmem:[%s87] sm:$0x1]
          %s89 = scalar_lea.vmem %s55, %s84 [#allocation6]
          %90 = vst [vmem:[%s89] sm:$0x1] %v88
          %s91 = sadd.s32 %s84, 1
          %s92 = sadd.s32 %s77, %s91
          %s93 = sld [smem:[#allocation5 + %s92]]
          %s94 = scalar_lea.vmem [#allocation2], %s93
          %v95 = vld [vmem:[%s94] sm:$0x1]
          %s96 = scalar_lea.vmem %s55, %s91 [#allocation6]
          %97 = vst [vmem:[%s96] sm:$0x1] %v95
          %s98 = sadd.s32 %s84, 2
          %s99 = sadd.s32 %s77, %s98
          %s100 = sld [smem:[#allocation5 + %s99]]
          %s101 = scalar_lea.vmem [#allocation2], %s100
          %v102 = vld [vmem:[%s101] sm:$0x1]
          %s103 = scalar_lea.vmem %s55, %s98 [#allocation6]
          %104 = vst [vmem:[%s103] sm:$0x1] %v102
          %s105 = sadd.s32 %s84, 3
          %s106 = sadd.s32 %s77, %s105
          %s107 = sld [smem:[#allocation5 + %s106]]
          %s108 = scalar_lea.vmem [#allocation2], %s107
          %v109 = vld [vmem:[%s108] sm:$0x1]
          %s110 = scalar_lea.vmem %s55, %s105 [#allocation6]
          %111 = vst [vmem:[%s110] sm:$0x1] %v109
          %s112 = sadd.s32 %s84, 4
          %s113 = sadd.s32 %s77, %s112
          %s114 = sld [smem:[#allocation5 + %s113]]
          %s115 = scalar_lea.vmem [#allocation2], %s114
          %v116 = vld [vmem:[%s115] sm:$0x1]
          %s117 = scalar_lea.vmem %s55, %s112 [#allocation6]
          %118 = vst [vmem:[%s117] sm:$0x1] %v116
          %s119 = sadd.s32 %s84, 5
          %s120 = sadd.s32 %s77, %s119
          %s121 = sld [smem:[#allocation5 + %s120]]
          %s122 = scalar_lea.vmem [#allocation2], %s121
          %v123 = vld [vmem:[%s122] sm:$0x1]
          %s124 = scalar_lea.vmem %s55, %s119 [#allocation6]
          %125 = vst [vmem:[%s124] sm:$0x1] %v123
          %s126 = sadd.s32 %s84, 6
          %s127 = sadd.s32 %s77, %s126
          %s128 = sld [smem:[#allocation5 + %s127]]
          %s129 = scalar_lea.vmem [#allocation2], %s128
          %v130 = vld [vmem:[%s129] sm:$0x1]
          %s131 = scalar_lea.vmem %s55, %s126 [#allocation6]
          %132 = vst [vmem:[%s131] sm:$0x1] %v130
          %s133 = sadd.s32 %s84, 7
          %s134 = sadd.s32 %s77, %s133
          %s135 = sld [smem:[#allocation5 + %s134]]
          %s136 = scalar_lea.vmem [#allocation2], %s135
          %v137 = vld [vmem:[%s136] sm:$0x1]
          %s138 = scalar_lea.vmem %s55, %s133 [#allocation6]
          %139 = vst [vmem:[%s138] sm:$0x1] %v137
        $region25: #{tpu_custom_call.1} parent=11 // loop_footer
          %s83 = sadd.s32 1, %s79
        $region26: #{tpu_custom_call.1} parent=11 // loop_footer_branch
          %78 = sbr.rel target = $region22
        $region27: #{tpu_custom_call.1} parent=11 // loop_exit
          _
        %v140 = vld [vmem:[%s55] sm:$0xff]
        %v141 = vld [vmem:[%s55 + $0x8] sm:$0xff]
        %v142 = vld [vmem:[%s55 + $0x10] sm:$0xff]
        %v143 = vld [vmem:[%s55 + $0x18] sm:$0xff]
        %v144 = vmul.f32 %v140, 11.313708
        %v145 = vmul.f32 %v141, 11.313708
        %v146 = vmul.f32 %v142, 11.313708
        %v147 = vmul.f32 %v143, 11.313708
        %148 = vst [vmem:[%s55] sm:$0xff] %v144
        %149 = vst [vmem:[%s55 + $0x8] sm:$0xff] %v145
        %150 = vst [vmem:[%s55 + $0x10] sm:$0xff] %v146
        %151 = vst [vmem:[%s55 + $0x18] sm:$0xff] %v147
        %s152 = sand.u32 %s28, 1
        %s153 = scalar_lea.sflag [#allocation7], %s152
        %s154 = sand.u32 %s28, 1
        %s155 = smul.addr %s154, 32
        %s156 = scalar_lea.vmem [#allocation6], %s155
        // Predicated region
        $region28: #{tpu_custom_call.1} parent=11 // pred_check
          %p157 = pneg %p34
        $region29: #{tpu_custom_call.1} parent=11 // pred_check_branch
          %159 = sbr.rel (%p157) target = $region31
        $region30: #{tpu_custom_call.1} parent=11 // pred_region
          %s160 = smul.u32 4, %s19
          %162 = vsyncadd %s153, 0
          %s163 = smul.addr %s160, 8
          %s164 = scalar_lea.hbm %s2, %s163
          %s165 = sshll.u32 %s156, 4
          %s166 = int_to_ptr.vmem [resolvable:$true] %s165
          %s167 = sshll.u32 %s164, 4
          %s168 = int_to_ptr.hbm [resolvable:$true] %s167
          %173 = dma.vmem_to_hbm [thread:$0]  %s166, 512, %s168, %s153, 128, 128, 8
        $region31: #{tpu_custom_call.1} parent=11 // pred_fallthru
          _
      $region12: #{tpu_custom_call.1} parent=5 // pred_fallthru
        _
      %p174 = scmp.le.s32.totalorder 1, %s19
      // Predicated region
      $region32: #{tpu_custom_call.1} parent=5 // pred_check
        %p175 = pneg %p174
      $region33: #{tpu_custom_call.1} parent=5 // pred_check_branch
        %177 = sbr.rel (%p175) target = $region35
      $region34: #{tpu_custom_call.1} parent=5 // pred_region
        %s178 = ssub.s32 %s19, 1
        // Predicated region
        $region36: #{tpu_custom_call.1} parent=34 // pred_check
          %p179 = pneg %p40
        $region37: #{tpu_custom_call.1} parent=34 // pred_check_branch
          %181 = sbr.rel (%p179) target = $region39
        $region38: #{tpu_custom_call.1} parent=34 // pred_region
          %s182 = sand.u32 %s31, 1
          %s183 = scalar_lea.sflag [#allocation7], %s182
          %s184 = sand.u32 %s31, 1
          %s185 = smul.addr %s184, 32
          %s186 = scalar_lea.vmem [#allocation6], %s185
          %188 = dma.done %s183, 512
        $region39: #{tpu_custom_call.1} parent=34 // pred_fallthru
          _
      $region35: #{tpu_custom_call.1} parent=5 // pred_fallthru
        _
    $region6: #{tpu_custom_call.1} parent=1 // loop_footer
      %s23 = sadd.s32 1, %s19
    $region7: #{tpu_custom_call.1} parent=1 // loop_footer_branch
      %18 = sbr.rel target = $region3
    $region8: #{tpu_custom_call.1} parent=1 // loop_exit
      _
    %189 = vsyncpa [#allocation7], 1
    %s190 = scalar_lea.sflag [#allocation7], 1
    %191 = vsyncpa %s190, 1
  %192 = vsyncmov [#allocation3]
  %s193 = vpop.sfrf %192
  %p194 = scmp.eq.s32.totalorder %s193, 0
  %p195 = pneg %p194
  %197 = shalt.err (%p195)

</llo_original>
